<compile_context>
chip_gen: v6e
topology: v6e:2x2x1
jax: 0.10.0
libtpu: 0.0.40
codegen_flags: <defaults>
</compile_context>

<pallas_src>
import numpy as np
import jax
import jax.numpy as jnp
from jax.experimental import pallas as pl
from jax.experimental.pallas import tpu as pltpu

_LANES = 128


def _cdiv(a, b):
    return -(-a // b)


def _round_up(n, m):
    return _cdiv(n, m) * m


def _decoder_kernel(x_ref, m_ref, out_ref):
    # x_ref:   (tm, 128) packed capsules (pack capsules of D_pad features/row)
    # m_ref:   (128, pack) bf16 block-diagonal ones (segment-sum matrix)
    # out_ref: (tm, pack) capsule L2 norms
    x = x_ref[...].astype(jnp.float32)          # one cast per tile, f32 math
    sq = x * x                                  # VPU
    # Exact-enough two-pass MXU segment sum: split f32 squares into hi+lo bf16
    # (RHS is exact 0/1 bf16), accumulate both single-pass matmuls in f32.
    hi = sq.astype(jnp.bfloat16)
    lo = (sq - hi.astype(jnp.float32)).astype(jnp.bfloat16)
    m = m_ref[...]
    s = jnp.dot(hi, m, preferred_element_type=jnp.float32)
    s = s + jnp.dot(lo, m, preferred_element_type=jnp.float32)
    out_ref[...] = jnp.sqrt(s).astype(out_ref.dtype)


def _reference(x):
    return jnp.sqrt(jnp.sum(x.astype(jnp.float32) ** 2, axis=-1)).astype(x.dtype)


def _choose_tile(rows, block_rows):
    """Rows per grid step.

    Multi-tile tiles are multiples of 128 (comfortably satisfies the (8,128)
    BlockSpec constraint for any caller-supplied block_rows); a tile that
    divides `rows` exactly is preferred so no zero-padded copy of the input
    needs to be materialized.
    """
    if rows <= max(block_rows, 8):
        return _round_up(rows, 8)                       # single tile
    cap = max(_LANES, (block_rows // _LANES) * _LANES)
    steps = _cdiv(rows, cap)
    tm = _round_up(_cdiv(rows, steps), _LANES)          # balanced, multiple of 128
    for cand in range(tm, max(tm // 2, _LANES) - 1, -_LANES):
        if rows % cand == 0:
            return cand                                 # exact divisor: no pad
    return tm


def decoder_forward(x, *, block_rows=4096, pallas_min_capsules=8192):
    """Capsule lengths: [B, N, D] -> [B, N], sqrt(sum(x**2, axis=2)).

    For tiny inputs the pallas_call launch + wrapper plumbing dominate, so
    fall back to plain XLA.  Pass pallas_min_capsules=0 to force the Pallas
    path.  Keep this wrapper under jit in production.
    """
    B, N, D = x.shape
    P = B * N

    if P < pallas_min_capsules:
        return _reference(x)

    # Pad capsule feature dim to a power of two dividing 128, then pack
    # `pack` capsules per 128-lane row.  Zero padding is exact for sum-of-squares.
    D_pad = 1
    while D_pad < D:
        D_pad *= 2
    if D_pad > _LANES:
        raise ValueError(f"capsule dim {D} too large to pack into {_LANES} lanes")
    pack = _LANES // D_pad

    rows = _cdiv(P, pack)                 # packed rows needed
    tm = _choose_tile(rows, block_rows)   # rows per grid step
    rows_pad = _round_up(rows, tm)
    P_pad = rows_pad * pack

    x2 = x.reshape(P, D)
    if P_pad != P or D_pad != D:
        # Single fused pad; skipped entirely on the aligned hot path
        # (D == D_pad, P lines up with pack*tm) -> no extra HBM pass.
        x2 = jnp.pad(x2, ((0, P_pad - P), (0, D_pad - D)))
    packed = x2.reshape(rows_pad, _LANES)          # lane-dense input slab

    # Block-diagonal ones: M[j*D_pad + d, j] = 1  ->  (sq @ M)[r, j] = sum_d sq[r, j*D_pad + d]
    # Built host-side (compile-time constant), bf16 is exact for 0/1.
    seg = jnp.asarray(
        np.kron(np.eye(pack, dtype=np.float32), np.ones((D_pad, 1), np.float32)),
        dtype=jnp.bfloat16)                        # (128, pack)

    grid = (rows_pad // tm,)

    # Double-buffered input + (lane-padded) output tiles; give the compiler an
    # explicit VMEM budget with ~2x headroom so callers can raise block_rows.
    vmem_est = 4 * tm * _LANES * 4                 # 2 bufs x (in tile + padded out tile)
    vmem_limit = int(min(max(2 * vmem_est, 16 << 20), 56 << 20))

    out = pl.pallas_call(
        _decoder_kernel,
        out_shape=jax.ShapeDtypeStruct((rows_pad, pack), x.dtype),
        grid=grid,
        in_specs=[
            pl.BlockSpec((tm, _LANES), lambda i: (i, 0)),
            pl.BlockSpec((_LANES, pack), lambda i: (0, 0)),   # constant block -> resident
        ],
        out_specs=pl.BlockSpec((tm, pack), lambda i: (i, 0)),
        compiler_params=pltpu.CompilerParams(
            dimension_semantics=("parallel",),
            vmem_limit_bytes=vmem_limit),
    )(packed, seg)

    flat = out.reshape(P_pad)
    if P_pad != P:
        flat = flat[:P]
    return flat.reshape(B, N)


def init_decoder_params(key):
    # nn.Linear(16, 1): weight (1, 16), bias (1,). Unused in forward, but
    # created deterministically to mirror the module's __init__.
    kw, kb = jax.random.split(key)
    bound = 1.0 / jnp.sqrt(16.0)
    weight = jax.random.uniform(kw, (1, 16), jnp.float32, -bound, bound)
    bias = jax.random.uniform(kb, (1,), jnp.float32, -bound, bound)
    return {"linear_weight": weight, "linear_bias": bias}


if __name__ == "__main__":
    key = jax.random.PRNGKey(0)
    k_params, k1, k2, k3 = jax.random.split(key, 4)

    _ = init_decoder_params(k_params)   # unused in forward (matches PyTorch)

    D = 16

    # 1) Module-native tiny shape (small-input fast path; no Pallas launch).
    B, N = 2, 10
    x = jax.random.normal(k1, (B, N, D), dtype=jnp.float32)
    out = jax.block_until_ready(decoder_forward(x))
    assert out.shape == (B, N)
    assert jnp.allclose(out, _reference(x), atol=1e-4, rtol=1e-4)

    # 2) Forced Pallas path: single tile, perfectly aligned (no pad copies).
    fwd = jax.jit(lambda t: decoder_forward(t, pallas_min_capsules=0))
    B2, N2 = 128, 10
    x2 = jax.random.normal(k2, (B2, N2, D), dtype=jnp.float32)
    out2 = jax.block_until_ready(fwd(x2))
    assert out2.shape == (B2, N2)
    assert jnp.allclose(out2, _reference(x2), atol=1e-4, rtol=1e-4)

    # 3) Forced Pallas path: multi-tile grid + ragged tail (pad + slice path).
    fwd_small_tiles = jax.jit(
        lambda t: decoder_forward(t, pallas_min_capsules=0, block_rows=128))
    B3, N3 = 205, 10
    x3 = jax.random.normal(k3, (B3, N3, D), dtype=jnp.float32)
    out3 = jax.block_until_ready(fwd_small_tiles(x3))
    assert out3.shape == (B3, N3)
    assert jnp.allclose(out3, _reference(x3), atol=1e-4, rtol=1e-4)

    print("KERNEL_OK")
</pallas_src>

<mosaic_0001>
module attributes {stable_mosaic.version = 11 : i64} {
  func.func @_decoder_kernel(%arg0: i32, %arg1: memref<160x128xf32, #tpu.memory_space<vmem>>, %arg2: memref<128x8xbf16, #tpu.memory_space<vmem>>, %arg3: memref<160x8xf32, #tpu.memory_space<vmem>>) attributes {dimension_semantics = [#tpu.dimension_semantics<parallel>], iteration_bounds = array<i64: 1>, scalar_prefetch = 0 : i64, scratch_operands = 0 : i64, tpu.core_type = #tpu.core_type<tc>, window_params = [{transform_indices = @transform_0, window_bounds = array<i64: 160, 128>}, {pipeline_mode = #tpu.pipeline_mode<synchronous>, transform_indices = @transform_1, window_bounds = array<i64: 128, 8>}, {transform_indices = @transform_2, window_bounds = array<i64: 160, 8>}]} {
    %c0 = arith.constant 0 : index
    %c0_0 = arith.constant 0 : index
    %0 = vector.load %arg1[%c0, %c0_0] : memref<160x128xf32, #tpu.memory_space<vmem>>, vector<160x128xf32>
    %1 = arith.mulf %0, %0 : vector<160x128xf32>
    %2 = arith.truncf %1 : vector<160x128xf32> to vector<160x128xbf16>
    %3 = arith.extf %2 : vector<160x128xbf16> to vector<160x128xf32>
    %4 = arith.subf %1, %3 : vector<160x128xf32>
    %5 = arith.truncf %4 : vector<160x128xf32> to vector<160x128xbf16>
    %c0_1 = arith.constant 0 : index
    %c0_2 = arith.constant 0 : index
    %6 = vector.load %arg2[%c0_1, %c0_2] : memref<128x8xbf16, #tpu.memory_space<vmem>>, vector<128x8xbf16>
    %cst = arith.constant dense<0.000000e+00> : vector<160x8xf32>
    %7 = tpu.matmul %2, %6, %cst {dimension_numbers = #tpu.dot_dimension_numbers<[1], [0], [0], [1], [0, 0, 1, 1], [], []>} : vector<160x128xbf16>, vector<128x8xbf16>, vector<160x8xf32> -> vector<160x8xf32>
    %cst_3 = arith.constant dense<0.000000e+00> : vector<160x8xf32>
    %8 = tpu.matmul %5, %6, %cst_3 {dimension_numbers = #tpu.dot_dimension_numbers<[1], [0], [0], [1], [0, 0, 1, 1], [], []>} : vector<160x128xbf16>, vector<128x8xbf16>, vector<160x8xf32> -> vector<160x8xf32>
    %9 = arith.addf %7, %8 : vector<160x8xf32>
    %10 = math.sqrt %9 : vector<160x8xf32>
    %c0_4 = arith.constant 0 : index
    %c0_5 = arith.constant 0 : index
    %11 = vector.load %arg3[%c0_4, %c0_5] : memref<160x8xf32, #tpu.memory_space<vmem>>, vector<160x8xf32>
    tpu.vector_store %arg3[%c0_4, %c0_5], %10 {strides = array<i32>} : memref<160x8xf32, #tpu.memory_space<vmem>>, vector<160x8xf32>,
    return
  }
  func.func @transform_0(%arg0: i32) -> (i32, i32) {
    %c0_i32 = arith.constant 0 : i32
    %c0_i32_0 = arith.constant 0 : i32
    return %arg0, %c0_i32 : i32, i32
  }
  func.func @transform_1(%arg0: i32) -> (i32, i32) {
    %c0_i32 = arith.constant 0 : i32
    %c0_i32_0 = arith.constant 0 : i32
    %c0_i32_1 = arith.constant 0 : i32
    return %c0_i32, %c0_i32_0 : i32, i32
  }
  func.func @transform_2(%arg0: i32) -> (i32, i32) {
    %c0_i32 = arith.constant 0 : i32
    %c0_i32_0 = arith.constant 0 : i32
    return %arg0, %c0_i32 : i32, i32
  }
}

</mosaic_0001>

<llo_original>
// kernel: _lambda_.1
$region0: #{_lambda_.1}
  #allocation0 [shape = 'u32[]', space=smem, size = 0x4, offset = 0x4, fixed_abs, tag = 'smem constant byte address 0x4 - core index']
  #allocation1 [shape = 'u32[144,128]{1,0:T(1,128)}', space=vmem, size = 0x12000, scoped, tag = 'internal scratch']
  %s0 = inlined_call_operand.vmem [shape: f32[160,128], index: 0, kind: input, shape index: {}]
  %s1 = inlined_call_operand.vmem [shape: bf16[128,8], index: 1, kind: input, shape index: {}]
  %s2 = inlined_call_operand.vmem [shape: f32[160,8], index: 2, kind: output, shape index: {}]
  %s3 = sld [smem:[#allocation0]]
  $region18: #{_lambda_.1} parent=0
    _
  %s5 = ssub.s32 1, %s3
  %s6 = scalar_select 0, %s5, %s3
  // Predicated region
  $region2: #{_lambda_.1} parent=0 // pred_check
    _
  $region3: #{_lambda_.1} parent=0 // pred_check_branch
    %8 = sbr.rel (0) target = $region5
  $region4: #{_lambda_.1} parent=0 // pred_region
    _
  $region5: #{_lambda_.1} parent=0 // pred_fallthru
    _
  // Predicated region
  $region6: #{_lambda_.1} parent=0 // pred_check
    _
  $region7: #{_lambda_.1} parent=0 // pred_check_branch
    %10 = sbr.rel (0) target = $region9
  $region8: #{_lambda_.1} parent=0 // pred_region
    _
  $region9: #{_lambda_.1} parent=0 // pred_fallthru
    _
  %v12 = vld [vmem:[%s0] sm:$0xff]
  %v13 = vld [vmem:[%s0 + $0x8] sm:$0xff]
  %v14 = vld [vmem:[%s0 + $0x10] sm:$0xff]
  %v15 = vld [vmem:[%s0 + $0x18] sm:$0xff]
  %v16 = vld [vmem:[%s0 + $0x20] sm:$0xff]
  %v17 = vld [vmem:[%s0 + $0x28] sm:$0xff]
  %v18 = vld [vmem:[%s0 + $0x30] sm:$0xff]
  %v19 = vld [vmem:[%s0 + $0x38] sm:$0xff]
  %v20 = vld [vmem:[%s0 + $0x40] sm:$0xff]
  %v21 = vld [vmem:[%s0 + $0x48] sm:$0xff]
  %v22 = vld [vmem:[%s0 + $0x50] sm:$0xff]
  %v23 = vld [vmem:[%s0 + $0x58] sm:$0xff]
  %v24 = vld [vmem:[%s0 + $0x60] sm:$0xff]
  %v25 = vld [vmem:[%s0 + $0x68] sm:$0xff]
  %v26 = vld [vmem:[%s0 + $0x70] sm:$0xff]
  %v27 = vld [vmem:[%s0 + $0x78] sm:$0xff]
  %v28 = vld [vmem:[%s0 + $0x80] sm:$0xff]
  %v29 = vld [vmem:[%s0 + $0x88] sm:$0xff]
  %v30 = vld [vmem:[%s0 + $0x90] sm:$0xff]
  %v31 = vld [vmem:[%s0 + $0x98] sm:$0xff]
  %v32 = vmul.f32 %v12, %v12
  %v33 = vmul.f32 %v13, %v13
  %v34 = vmul.f32 %v14, %v14
  %v35 = vmul.f32 %v15, %v15
  %v36 = vmul.f32 %v16, %v16
  %v37 = vmul.f32 %v17, %v17
  %v38 = vmul.f32 %v18, %v18
  %v39 = vmul.f32 %v19, %v19
  %v40 = vmul.f32 %v20, %v20
  %v41 = vmul.f32 %v21, %v21
  %v42 = vmul.f32 %v22, %v22
  %v43 = vmul.f32 %v23, %v23
  %v44 = vmul.f32 %v24, %v24
  %v45 = vmul.f32 %v25, %v25
  %v46 = vmul.f32 %v26, %v26
  %v47 = vmul.f32 %v27, %v27
  %v48 = vmul.f32 %v28, %v28
  %v49 = vmul.f32 %v29, %v29
  %v50 = vmul.f32 %v30, %v30
  %v51 = vmul.f32 %v31, %v31
  %v52 = vpack.c.bf16 %v33, %v32
  %v53 = vpack.c.bf16 %v35, %v34
  %v54 = vpack.c.bf16 %v37, %v36
  %v55 = vpack.c.bf16 %v39, %v38
  %v56 = vpack.c.bf16 %v41, %v40
  %v57 = vpack.c.bf16 %v43, %v42
  %v58 = vpack.c.bf16 %v45, %v44
  %v59 = vpack.c.bf16 %v47, %v46
  %v60 = vpack.c.bf16 %v49, %v48
  %v61 = vpack.c.bf16 %v51, %v50
  %v62 = vunpack.c.l.bf16 %v52
  %v63 = vunpack.c.h.bf16 %v52
  %v64 = vunpack.c.l.bf16 %v53
  %v65 = vunpack.c.h.bf16 %v53
  %v66 = vunpack.c.l.bf16 %v54
  %v67 = vunpack.c.h.bf16 %v54
  %v68 = vunpack.c.l.bf16 %v55
  %v69 = vunpack.c.h.bf16 %v55
  %v70 = vunpack.c.l.bf16 %v56
  %v71 = vunpack.c.h.bf16 %v56
  %v72 = vunpack.c.l.bf16 %v57
  %v73 = vunpack.c.h.bf16 %v57
  %v74 = vunpack.c.l.bf16 %v58
  %v75 = vunpack.c.h.bf16 %v58
  %v76 = vunpack.c.l.bf16 %v59
  %v77 = vunpack.c.h.bf16 %v59
  %v78 = vunpack.c.l.bf16 %v60
  %v79 = vunpack.c.h.bf16 %v60
  %v80 = vunpack.c.l.bf16 %v61
  %v81 = vunpack.c.h.bf16 %v61
  %v82 = vsub.f32 %v32, %v62
  %v83 = vsub.f32 %v33, %v63
  %v84 = vsub.f32 %v34, %v64
  %v85 = vsub.f32 %v35, %v65
  %v86 = vsub.f32 %v36, %v66
  %v87 = vsub.f32 %v37, %v67
  %v88 = vsub.f32 %v38, %v68
  %v89 = vsub.f32 %v39, %v69
  %v90 = vsub.f32 %v40, %v70
  %v91 = vsub.f32 %v41, %v71
  %v92 = vsub.f32 %v42, %v72
  %v93 = vsub.f32 %v43, %v73
  %v94 = vsub.f32 %v44, %v74
  %v95 = vsub.f32 %v45, %v75
  %v96 = vsub.f32 %v46, %v76
  %v97 = vsub.f32 %v47, %v77
  %v98 = vsub.f32 %v48, %v78
  %v99 = vsub.f32 %v49, %v79
  %v100 = vsub.f32 %v50, %v80
  %v101 = vsub.f32 %v51, %v81
  %v102 = vpack.c.bf16 %v83, %v82
  %v103 = vpack.c.bf16 %v85, %v84
  %v104 = vpack.c.bf16 %v87, %v86
  %v105 = vpack.c.bf16 %v89, %v88
  %v106 = vpack.c.bf16 %v91, %v90
  %v107 = vpack.c.bf16 %v93, %v92
  %v108 = vpack.c.bf16 %v95, %v94
  %v109 = vpack.c.bf16 %v97, %v96
  %v110 = vpack.c.bf16 %v99, %v98
  %v111 = vpack.c.bf16 %v101, %v100
  %v112 = vld [vmem:[%s1] sm:$0xf]
  %v113 = vld [vmem:[%s1 + $0x4] sm:$0xf]
  %v114 = vld [vmem:[%s1 + $0x8] sm:$0xf]
  %v115 = vld [vmem:[%s1 + $0xc] sm:$0xf]
  %v116 = vld [vmem:[%s1 + $0x10] sm:$0xf]
  %v117 = vld [vmem:[%s1 + $0x14] sm:$0xf]
  %v118 = vld [vmem:[%s1 + $0x18] sm:$0xf]
  %v119 = vld [vmem:[%s1 + $0x1c] sm:$0xf]
  %v120 = vld [vmem:[%s1 + $0x20] sm:$0xf]
  %v121 = vld [vmem:[%s1 + $0x24] sm:$0xf]
  %v122 = vld [vmem:[%s1 + $0x28] sm:$0xf]
  %v123 = vld [vmem:[%s1 + $0x2c] sm:$0xf]
  %v124 = vld [vmem:[%s1 + $0x30] sm:$0xf]
  %v125 = vld [vmem:[%s1 + $0x34] sm:$0xf]
  %v126 = vld [vmem:[%s1 + $0x38] sm:$0xf]
  %v127 = vld [vmem:[%s1 + $0x3c] sm:$0xf]
  %v144 = vunpack.c.l.b16 %v112
  %v145 = vunpack.c.l.b16 %v113
  %v146 = vunpack.c.l.b16 %v114
  %v147 = vunpack.c.l.b16 %v115
  %v148 = vunpack.c.l.b16 %v116
  %v149 = vunpack.c.l.b16 %v117
  %v150 = vunpack.c.l.b16 %v118
  %v151 = vunpack.c.l.b16 %v119
  %v152 = vunpack.c.l.b16 %v120
  %v153 = vunpack.c.l.b16 %v121
  %v154 = vunpack.c.l.b16 %v122
  %v155 = vunpack.c.l.b16 %v123
  %v156 = vunpack.c.l.b16 %v124
  %v157 = vunpack.c.l.b16 %v125
  %v158 = vunpack.c.l.b16 %v126
  %v159 = vunpack.c.l.b16 %v127
  %v160 = vpack.c.b16 %v145, %v144
  %v161 = vpack.c.b16 %v147, %v146
  %v162 = vpack.c.b16 %v149, %v148
  %v163 = vpack.c.b16 %v151, %v150
  %v164 = vpack.c.b16 %v153, %v152
  %v165 = vpack.c.b16 %v155, %v154
  %v166 = vpack.c.b16 %v157, %v156
  %v167 = vpack.c.b16 %v159, %v158
  %176 = vmatprep.subr.bf16.mxu0 0
  %177 = vmatpush1.bf16.msra.mxu0 %v167
  %178 = vmatprep.subr.bf16.mxu0 0
  %179 = vmatpush1.bf16.msra.mxu0 %v166
  %180 = vmatprep.subr.bf16.mxu0 0
  %181 = vmatpush1.bf16.msra.mxu0 %v165
  %182 = vmatprep.subr.bf16.mxu0 0
  %183 = vmatpush1.bf16.msra.mxu0 %v164
  %184 = vmatprep.subr.bf16.mxu0 0
  %185 = vmatpush1.bf16.msra.mxu0 %v163
  %186 = vmatprep.subr.bf16.mxu0 0
  %187 = vmatpush1.bf16.msra.mxu0 %v162
  %188 = vmatprep.subr.bf16.mxu0 0
  %189 = vmatpush1.bf16.msra.mxu0 %v161
  %190 = vmatprep.subr.bf16.mxu0 0
  %191 = vmatpush1.bf16.msra.mxu0 %v160
  %192 = vmatprep.subr.bf16.mxu0 0
  %193 = vmatpush2.bf16.msra.mxu0 0
  %194 = vmatprep.subr.bf16.mxu0 0
  %195 = vmatpush2.bf16.msra.mxu0 0
  %196 = vmatprep.subr.bf16.mxu0 0
  %197 = vmatpush2.bf16.msra.mxu0 0
  %198 = vmatprep.subr.bf16.mxu0 0
  %199 = vmatpush2.bf16.msra.mxu0 0
  %200 = vmatprep.subr.bf16.mxu0 0
  %201 = vmatpush2.bf16.msra.mxu0 0
  %202 = vmatprep.subr.bf16.mxu0 0
  %203 = vmatpush2.bf16.msra.mxu0 0
  %204 = vmatprep.subr.bf16.mxu0 0
  %205 = vmatpush2.bf16.msra.mxu0 0
  %206 = vmatprep.subr.bf16.mxu0 0
  %207 = vmatpush2.bf16.msra.mxu0 0
  %208 = vmatprep.mubr.bf16.mxu0 0
  %209 = vmatmul.mubr.bf16.gmra.mxu0 %v102
  %v210 = vpop.f32.mrf.mxu0
  %v211 = vadd.f32 0.0, %v210
  %v212 = vpop.f32.mrf.mxu0
  %v213 = vpop.f32.mrf.mxu0
  %v214 = vadd.f32 0.0, %v213
  %v215 = vpop.f32.mrf.mxu0
  %216 = vmatprep.mubr.bf16.mxu0 0
  %217 = vmatmul.mubr.bf16.gmra.mxu0 %v103
  %v218 = vpop.f32.mrf.mxu0
  %v219 = vadd.f32 0.0, %v218
  %v220 = vpop.f32.mrf.mxu0
  %v221 = vpop.f32.mrf.mxu0
  %v222 = vadd.f32 0.0, %v221
  %v223 = vpop.f32.mrf.mxu0
  %224 = vmatprep.mubr.bf16.mxu0 0
  %225 = vmatmul.mubr.bf16.gmra.mxu0 %v104
  %v226 = vpop.f32.mrf.mxu0
  %v227 = vadd.f32 0.0, %v226
  %v228 = vpop.f32.mrf.mxu0
  %v229 = vpop.f32.mrf.mxu0
  %v230 = vadd.f32 0.0, %v229
  %v231 = vpop.f32.mrf.mxu0
  %232 = vmatprep.mubr.bf16.mxu0 0
  %233 = vmatmul.mubr.bf16.gmra.mxu0 %v105
  %v234 = vpop.f32.mrf.mxu0
  %v235 = vadd.f32 0.0, %v234
  %v236 = vpop.f32.mrf.mxu0
  %v237 = vpop.f32.mrf.mxu0
  %v238 = vadd.f32 0.0, %v237
  %v239 = vpop.f32.mrf.mxu0
  %240 = vmatprep.mubr.bf16.mxu0 0
  %241 = vmatmul.mubr.bf16.gmra.mxu0 %v106
  %v242 = vpop.f32.mrf.mxu0
  %v243 = vadd.f32 0.0, %v242
  %v244 = vpop.f32.mrf.mxu0
  %v245 = vpop.f32.mrf.mxu0
  %v246 = vadd.f32 0.0, %v245
  %v247 = vpop.f32.mrf.mxu0
  %248 = vmatprep.mubr.bf16.mxu0 0
  %249 = vmatmul.mubr.bf16.gmra.mxu0 %v107
  %v250 = vpop.f32.mrf.mxu0
  %v251 = vadd.f32 0.0, %v250
  %v252 = vpop.f32.mrf.mxu0
  %v253 = vpop.f32.mrf.mxu0
  %v254 = vadd.f32 0.0, %v253
  %v255 = vpop.f32.mrf.mxu0
  %256 = vmatprep.mubr.bf16.mxu0 0
  %257 = vmatmul.mubr.bf16.gmra.mxu0 %v108
  %v258 = vpop.f32.mrf.mxu0
  %v259 = vadd.f32 0.0, %v258
  %v260 = vpop.f32.mrf.mxu0
  %v261 = vpop.f32.mrf.mxu0
  %v262 = vadd.f32 0.0, %v261
  %v263 = vpop.f32.mrf.mxu0
  %264 = vmatprep.mubr.bf16.mxu0 0
  %265 = vmatmul.mubr.bf16.gmra.mxu0 %v109
  %v266 = vpop.f32.mrf.mxu0
  %v267 = vadd.f32 0.0, %v266
  %v268 = vpop.f32.mrf.mxu0
  %v269 = vpop.f32.mrf.mxu0
  %v270 = vadd.f32 0.0, %v269
  %v271 = vpop.f32.mrf.mxu0
  %272 = vmatprep.mubr.bf16.mxu0 0
  %273 = vmatmul.mubr.bf16.gmra.mxu0 %v110
  %v274 = vpop.f32.mrf.mxu0
  %v275 = vadd.f32 0.0, %v274
  %v276 = vpop.f32.mrf.mxu0
  %v277 = vpop.f32.mrf.mxu0
  %v278 = vadd.f32 0.0, %v277
  %v279 = vpop.f32.mrf.mxu0
  %280 = vmatprep.mubr.bf16.mxu0 0
  %281 = vmatmul.mubr.bf16.gmra.mxu0 %v111
  %v282 = vpop.f32.mrf.mxu0
  %v283 = vadd.f32 0.0, %v282
  %v284 = vpop.f32.mrf.mxu0
  %v285 = vpop.f32.mrf.mxu0
  %v286 = vadd.f32 0.0, %v285
  %v287 = vpop.f32.mrf.mxu0
  %288 = vdwg.mxu0
  %289 = vmatprep.subr.bf16.mxu0 0
  %290 = vmatpush1.bf16.msra.mxu0 %v167
  %291 = vmatprep.subr.bf16.mxu0 0
  %292 = vmatpush1.bf16.msra.mxu0 %v166
  %293 = vmatprep.subr.bf16.mxu0 0
  %294 = vmatpush1.bf16.msra.mxu0 %v165
  %295 = vmatprep.subr.bf16.mxu0 0
  %296 = vmatpush1.bf16.msra.mxu0 %v164
  %297 = vmatprep.subr.bf16.mxu0 0
  %298 = vmatpush1.bf16.msra.mxu0 %v163
  %299 = vmatprep.subr.bf16.mxu0 0
  %300 = vmatpush1.bf16.msra.mxu0 %v162
  %301 = vmatprep.subr.bf16.mxu0 0
  %302 = vmatpush1.bf16.msra.mxu0 %v161
  %303 = vmatprep.subr.bf16.mxu0 0
  %304 = vmatpush1.bf16.msra.mxu0 %v160
  %305 = vmatprep.subr.bf16.mxu0 0
  %306 = vmatpush2.bf16.msra.mxu0 0
  %307 = vmatprep.subr.bf16.mxu0 0
  %308 = vmatpush2.bf16.msra.mxu0 0
  %309 = vmatprep.subr.bf16.mxu0 0
  %310 = vmatpush2.bf16.msra.mxu0 0
  %311 = vmatprep.subr.bf16.mxu0 0
  %312 = vmatpush2.bf16.msra.mxu0 0
  %313 = vmatprep.subr.bf16.mxu0 0
  %314 = vmatpush2.bf16.msra.mxu0 0
  %315 = vmatprep.subr.bf16.mxu0 0
  %316 = vmatpush2.bf16.msra.mxu0 0
  %317 = vmatprep.subr.bf16.mxu0 0
  %318 = vmatpush2.bf16.msra.mxu0 0
  %319 = vmatprep.subr.bf16.mxu0 0
  %320 = vmatpush2.bf16.msra.mxu0 0
  %321 = vmatprep.mubr.bf16.mxu0 0
  %322 = vmatmul.mubr.bf16.gmra.mxu0 %v52
  %v323 = vpop.f32.mrf.mxu0
  %v324 = vadd.f32 %v211, %v323
  %v325 = vpop.f32.mrf.mxu0
  %v326 = vpop.f32.mrf.mxu0
  %v327 = vadd.f32 %v214, %v326
  %v328 = vpop.f32.mrf.mxu0
  %329 = vmatprep.mubr.bf16.mxu0 0
  %330 = vmatmul.mubr.bf16.gmra.mxu0 %v53
  %v331 = vpop.f32.mrf.mxu0
  %v332 = vadd.f32 %v219, %v331
  %v333 = vpop.f32.mrf.mxu0
  %v334 = vpop.f32.mrf.mxu0
  %v335 = vadd.f32 %v222, %v334
  %v336 = vpop.f32.mrf.mxu0
  %337 = vmatprep.mubr.bf16.mxu0 0
  %338 = vmatmul.mubr.bf16.gmra.mxu0 %v54
  %v339 = vpop.f32.mrf.mxu0
  %v340 = vadd.f32 %v227, %v339
  %v341 = vpop.f32.mrf.mxu0
  %v342 = vpop.f32.mrf.mxu0
  %v343 = vadd.f32 %v230, %v342
  %v344 = vpop.f32.mrf.mxu0
  %345 = vmatprep.mubr.bf16.mxu0 0
  %346 = vmatmul.mubr.bf16.gmra.mxu0 %v55
  %v347 = vpop.f32.mrf.mxu0
  %v348 = vadd.f32 %v235, %v347
  %v349 = vpop.f32.mrf.mxu0
  %v350 = vpop.f32.mrf.mxu0
  %v351 = vadd.f32 %v238, %v350
  %v352 = vpop.f32.mrf.mxu0
  %353 = vmatprep.mubr.bf16.mxu0 0
  %354 = vmatmul.mubr.bf16.gmra.mxu0 %v56
  %v355 = vpop.f32.mrf.mxu0
  %v356 = vadd.f32 %v243, %v355
  %v357 = vpop.f32.mrf.mxu0
  %v358 = vpop.f32.mrf.mxu0
  %v359 = vadd.f32 %v246, %v358
  %v360 = vpop.f32.mrf.mxu0
  %361 = vmatprep.mubr.bf16.mxu0 0
  %362 = vmatmul.mubr.bf16.gmra.mxu0 %v57
  %v363 = vpop.f32.mrf.mxu0
  %v364 = vadd.f32 %v251, %v363
  %v365 = vpop.f32.mrf.mxu0
  %v366 = vpop.f32.mrf.mxu0
  %v367 = vadd.f32 %v254, %v366
  %v368 = vpop.f32.mrf.mxu0
  %369 = vmatprep.mubr.bf16.mxu0 0
  %370 = vmatmul.mubr.bf16.gmra.mxu0 %v58
  %v371 = vpop.f32.mrf.mxu0
  %v372 = vadd.f32 %v259, %v371
  %v373 = vpop.f32.mrf.mxu0
  %v374 = vpop.f32.mrf.mxu0
  %v375 = vadd.f32 %v262, %v374
  %v376 = vpop.f32.mrf.mxu0
  %377 = vmatprep.mubr.bf16.mxu0 0
  %378 = vmatmul.mubr.bf16.gmra.mxu0 %v59
  %v379 = vpop.f32.mrf.mxu0
  %v380 = vadd.f32 %v267, %v379
  %v381 = vpop.f32.mrf.mxu0
  %v382 = vpop.f32.mrf.mxu0
  %v383 = vadd.f32 %v270, %v382
  %v384 = vpop.f32.mrf.mxu0
  %385 = vmatprep.mubr.bf16.mxu0 0
  %386 = vmatmul.mubr.bf16.gmra.mxu0 %v60
  %v387 = vpop.f32.mrf.mxu0
  %v388 = vadd.f32 %v275, %v387
  %v389 = vpop.f32.mrf.mxu0
  %v390 = vpop.f32.mrf.mxu0
  %v391 = vadd.f32 %v278, %v390
  %v392 = vpop.f32.mrf.mxu0
  %393 = vmatprep.mubr.bf16.mxu0 0
  %394 = vmatmul.mubr.bf16.gmra.mxu0 %v61
  %v395 = vpop.f32.mrf.mxu0
  %v396 = vadd.f32 %v283, %v395
  %v397 = vpop.f32.mrf.mxu0
  %v398 = vpop.f32.mrf.mxu0
  %v399 = vadd.f32 %v286, %v398
  %v400 = vpop.f32.mrf.mxu0
  %401 = vdwg.mxu0
  %v402 = vrsqrt.pop %v324
  %v403 = vmul.f32 %v324, %v402
  %vm404 = vcmp.eq.f32.partialorder %v324, inf
  %v405 = vsel %vm404, %v324, %v403
  %vm406 = vcmp.eq.f32.partialorder %v324, 0.0
  %v407 = vand.u32 %v324, 2147483648
  %v408 = vsel %vm406, %v407, %v405
  %v409 = vrsqrt.pop %v327
  %v410 = vmul.f32 %v327, %v409
  %vm411 = vcmp.eq.f32.partialorder %v327, inf
  %v412 = vsel %vm411, %v327, %v410
  %vm413 = vcmp.eq.f32.partialorder %v327, 0.0
  %v414 = vand.u32 %v327, 2147483648
  %v415 = vsel %vm413, %v414, %v412
  %v416 = vrsqrt.pop %v332
  %v417 = vmul.f32 %v332, %v416
  %vm418 = vcmp.eq.f32.partialorder %v332, inf
  %v419 = vsel %vm418, %v332, %v417
  %vm420 = vcmp.eq.f32.partialorder %v332, 0.0
  %v421 = vand.u32 %v332, 2147483648
  %v422 = vsel %vm420, %v421, %v419
  %v423 = vrsqrt.pop %v335
  %v424 = vmul.f32 %v335, %v423
  %vm425 = vcmp.eq.f32.partialorder %v335, inf
  %v426 = vsel %vm425, %v335, %v424
  %vm427 = vcmp.eq.f32.partialorder %v335, 0.0
  %v428 = vand.u32 %v335, 2147483648
  %v429 = vsel %vm427, %v428, %v426
  %v430 = vrsqrt.pop %v340
  %v431 = vmul.f32 %v340, %v430
  %vm432 = vcmp.eq.f32.partialorder %v340, inf
  %v433 = vsel %vm432, %v340, %v431
  %vm434 = vcmp.eq.f32.partialorder %v340, 0.0
  %v435 = vand.u32 %v340, 2147483648
  %v436 = vsel %vm434, %v435, %v433
  %v437 = vrsqrt.pop %v343
  %v438 = vmul.f32 %v343, %v437
  %vm439 = vcmp.eq.f32.partialorder %v343, inf
  %v440 = vsel %vm439, %v343, %v438
  %vm441 = vcmp.eq.f32.partialorder %v343, 0.0
  %v442 = vand.u32 %v343, 2147483648
  %v443 = vsel %vm441, %v442, %v440
  %v444 = vrsqrt.pop %v348
  %v445 = vmul.f32 %v348, %v444
  %vm446 = vcmp.eq.f32.partialorder %v348, inf
  %v447 = vsel %vm446, %v348, %v445
  %vm448 = vcmp.eq.f32.partialorder %v348, 0.0
  %v449 = vand.u32 %v348, 2147483648
  %v450 = vsel %vm448, %v449, %v447
  %v451 = vrsqrt.pop %v351
  %v452 = vmul.f32 %v351, %v451
  %vm453 = vcmp.eq.f32.partialorder %v351, inf
  %v454 = vsel %vm453, %v351, %v452
  %vm455 = vcmp.eq.f32.partialorder %v351, 0.0
  %v456 = vand.u32 %v351, 2147483648
  %v457 = vsel %vm455, %v456, %v454
  %v458 = vrsqrt.pop %v356
  %v459 = vmul.f32 %v356, %v458
  %vm460 = vcmp.eq.f32.partialorder %v356, inf
  %v461 = vsel %vm460, %v356, %v459
  %vm462 = vcmp.eq.f32.partialorder %v356, 0.0
  %v463 = vand.u32 %v356, 2147483648
  %v464 = vsel %vm462, %v463, %v461
  %v465 = vrsqrt.pop %v359
  %v466 = vmul.f32 %v359, %v465
  %vm467 = vcmp.eq.f32.partialorder %v359, inf
  %v468 = vsel %vm467, %v359, %v466
  %vm469 = vcmp.eq.f32.partialorder %v359, 0.0
  %v470 = vand.u32 %v359, 2147483648
  %v471 = vsel %vm469, %v470, %v468
  %v472 = vrsqrt.pop %v364
  %v473 = vmul.f32 %v364, %v472
  %vm474 = vcmp.eq.f32.partialorder %v364, inf
  %v475 = vsel %vm474, %v364, %v473
  %vm476 = vcmp.eq.f32.partialorder %v364, 0.0
  %v477 = vand.u32 %v364, 2147483648
  %v478 = vsel %vm476, %v477, %v475
  %v479 = vrsqrt.pop %v367
  %v480 = vmul.f32 %v367, %v479
  %vm481 = vcmp.eq.f32.partialorder %v367, inf
  %v482 = vsel %vm481, %v367, %v480
  %vm483 = vcmp.eq.f32.partialorder %v367, 0.0
  %v484 = vand.u32 %v367, 2147483648
  %v485 = vsel %vm483, %v484, %v482
  %v486 = vrsqrt.pop %v372
  %v487 = vmul.f32 %v372, %v486
  %vm488 = vcmp.eq.f32.partialorder %v372, inf
  %v489 = vsel %vm488, %v372, %v487
  %vm490 = vcmp.eq.f32.partialorder %v372, 0.0
  %v491 = vand.u32 %v372, 2147483648
  %v492 = vsel %vm490, %v491, %v489
  %v493 = vrsqrt.pop %v375
  %v494 = vmul.f32 %v375, %v493
  %vm495 = vcmp.eq.f32.partialorder %v375, inf
  %v496 = vsel %vm495, %v375, %v494
  %vm497 = vcmp.eq.f32.partialorder %v375, 0.0
  %v498 = vand.u32 %v375, 2147483648
  %v499 = vsel %vm497, %v498, %v496
  %v500 = vrsqrt.pop %v380
  %v501 = vmul.f32 %v380, %v500
  %vm502 = vcmp.eq.f32.partialorder %v380, inf
  %v503 = vsel %vm502, %v380, %v501
  %vm504 = vcmp.eq.f32.partialorder %v380, 0.0
  %v505 = vand.u32 %v380, 2147483648
  %v506 = vsel %vm504, %v505, %v503
  %v507 = vrsqrt.pop %v383
  %v508 = vmul.f32 %v383, %v507
  %vm509 = vcmp.eq.f32.partialorder %v383, inf
  %v510 = vsel %vm509, %v383, %v508
  %vm511 = vcmp.eq.f32.partialorder %v383, 0.0
  %v512 = vand.u32 %v383, 2147483648
  %v513 = vsel %vm511, %v512, %v510
  %v514 = vrsqrt.pop %v388
  %v515 = vmul.f32 %v388, %v514
  %vm516 = vcmp.eq.f32.partialorder %v388, inf
  %v517 = vsel %vm516, %v388, %v515
  %vm518 = vcmp.eq.f32.partialorder %v388, 0.0
  %v519 = vand.u32 %v388, 2147483648
  %v520 = vsel %vm518, %v519, %v517
  %v521 = vrsqrt.pop %v391
  %v522 = vmul.f32 %v391, %v521
  %vm523 = vcmp.eq.f32.partialorder %v391, inf
  %v524 = vsel %vm523, %v391, %v522
  %vm525 = vcmp.eq.f32.partialorder %v391, 0.0
  %v526 = vand.u32 %v391, 2147483648
  %v527 = vsel %vm525, %v526, %v524
  %v528 = vrsqrt.pop %v396
  %v529 = vmul.f32 %v396, %v528
  %vm530 = vcmp.eq.f32.partialorder %v396, inf
  %v531 = vsel %vm530, %v396, %v529
  %vm532 = vcmp.eq.f32.partialorder %v396, 0.0
  %v533 = vand.u32 %v396, 2147483648
  %v534 = vsel %vm532, %v533, %v531
  %v535 = vrsqrt.pop %v399
  %v536 = vmul.f32 %v399, %v535
  %vm537 = vcmp.eq.f32.partialorder %v399, inf
  %v538 = vsel %vm537, %v399, %v536
  %vm539 = vcmp.eq.f32.partialorder %v399, 0.0
  %v540 = vand.u32 %v399, 2147483648
  %v541 = vsel %vm539, %v540, %v538
  %vm542 = vcmask 64512
  %543 = vst.msk [vmem:[%s2] sm:$0xff] %vm542, %v408
  %544 = vst.msk [vmem:[%s2 + $0x8] sm:$0xff] %vm542, %v415
  %545 = vst.msk [vmem:[%s2 + $0x10] sm:$0xff] %vm542, %v422
  %546 = vst.msk [vmem:[%s2 + $0x18] sm:$0xff] %vm542, %v429
  %547 = vst.msk [vmem:[%s2 + $0x20] sm:$0xff] %vm542, %v436
  %548 = vst.msk [vmem:[%s2 + $0x28] sm:$0xff] %vm542, %v443
  %549 = vst.msk [vmem:[%s2 + $0x30] sm:$0xff] %vm542, %v450
  %550 = vst.msk [vmem:[%s2 + $0x38] sm:$0xff] %vm542, %v457
  %551 = vst.msk [vmem:[%s2 + $0x40] sm:$0xff] %vm542, %v464
  %552 = vst.msk [vmem:[%s2 + $0x48] sm:$0xff] %vm542, %v471
  %553 = vst.msk [vmem:[%s2 + $0x50] sm:$0xff] %vm542, %v478
  %554 = vst.msk [vmem:[%s2 + $0x58] sm:$0xff] %vm542, %v485
  %555 = vst.msk [vmem:[%s2 + $0x60] sm:$0xff] %vm542, %v492
  %556 = vst.msk [vmem:[%s2 + $0x68] sm:$0xff] %vm542, %v499
  %557 = vst.msk [vmem:[%s2 + $0x70] sm:$0xff] %vm542, %v506
  %558 = vst.msk [vmem:[%s2 + $0x78] sm:$0xff] %vm542, %v513
  %559 = vst.msk [vmem:[%s2 + $0x80] sm:$0xff] %vm542, %v520
  %560 = vst.msk [vmem:[%s2 + $0x88] sm:$0xff] %vm542, %v527
  %561 = vst.msk [vmem:[%s2 + $0x90] sm:$0xff] %vm542, %v534
  %562 = vst.msk [vmem:[%s2 + $0x98] sm:$0xff] %vm542, %v541
  // Predicated region
  $region10: #{_lambda_.1} parent=0 // pred_check
    _
  $region11: #{_lambda_.1} parent=0 // pred_check_branch
    %564 = sbr.rel (0) target = $region13
  $region12: #{_lambda_.1} parent=0 // pred_region
    _
  $region13: #{_lambda_.1} parent=0 // pred_fallthru
    _
  // Predicated region
  $region14: #{_lambda_.1} parent=0 // pred_check
    _
  $region15: #{_lambda_.1} parent=0 // pred_check_branch
    %566 = sbr.rel (0) target = $region17
  $region16: #{_lambda_.1} parent=0 // pred_region
    _
  $region17: #{_lambda_.1} parent=0 // pred_fallthru
    _

</llo_original>
